<compile_context>
chip_gen: v5e
topology: v5e:2x2
jax: 0.10.0
libtpu: 0.0.40
codegen_flags: <defaults>
</compile_context>

<pallas_src>
from math import gcd

import numpy as np
import jax
import jax.numpy as jnp
from jax.experimental import pallas as pl
from jax.experimental.pallas import tpu as pltpu


def make_sinusoid_table(n_position: int, d_hid: int) -> jnp.ndarray:
    """Deterministic sinusoid position-encoding table, shape (1, n_position, d_hid)."""
    pos = np.arange(n_position, dtype=np.float64)[:, None]            # (P, 1)
    hid = np.arange(d_hid, dtype=np.float64)[None, :]                 # (1, D)
    angle = pos / np.power(10000.0, 2.0 * (hid // 2) / d_hid)         # (P, D)
    table = np.empty_like(angle)
    table[:, 0::2] = np.sin(angle[:, 0::2])
    table[:, 1::2] = np.cos(angle[:, 1::2])
    return jnp.asarray(table[None, ...], dtype=jnp.float32)           # (1, P, D)


def _round_up(a: int, b: int) -> int:
    return (a + b - 1) // b * b


def _sublanes(dtype) -> int:
    # 32-bit -> 8 sublanes, 16-bit -> 16, 8-bit -> 32 (packed sublane tiling).
    return max(8, 32 // jnp.dtype(dtype).itemsize)


def _choose_fold(batch: int, n_flat: int, sub: int) -> int:
    """Pick k so x viewed as (batch*k, n_flat//k) has full sublane occupancy."""
    if batch % sub == 0:
        return 1
    # Prefer k == sub (pos rows fill exactly one sublane group, zero padding);
    # fall back to the minimum k that makes batch*k a multiple of `sub`.
    for k in (sub, sub // gcd(batch, sub)):
        if k > 1 and n_flat % k == 0:
            return k
    return 1


def _add_pe_kernel(x_ref, pos_ref, o_ref):
    # x_ref/o_ref: (B*k, T) lane-dense tile; pos_ref: (k, T) matching tile.
    # Table is pre-cast to x.dtype on the host, so no per-block convert here.
    rep = x_ref.shape[0] // pos_ref.shape[0]        # static (block shapes)
    pos = pos_ref[...]
    if rep > 1:
        pos = jnp.tile(pos, (rep, 1))               # cheap sublane replication
    o_ref[...] = x_ref[...] + pos


def positional_encoding_forward(
    x: jnp.ndarray,
    pos_table: jnp.ndarray,
    *,
    target_tile_bytes: int = 4 * 1024 * 1024,
) -> jnp.ndarray:
    """x: (B, S, D); pos_table: (1, n_position, D). Returns x + pos_table[:, :S]."""
    B, S, D = x.shape
    _, P, Dt = pos_table.shape
    assert Dt == D and S <= P, "pos_table must cover (n_position >= S, d_hid == D)"

    N = S * D
    itemsize = jnp.dtype(x.dtype).itemsize
    sub = _sublanes(x.dtype)

    # Sublane folding (see header); k == 1 means plain (B, S*D) flattening.
    k = _choose_fold(B, N, sub)
    R, M = B * k, N // k
    Rp = _round_up(R, sub)          # padded rows of the x/out VMEM block
    kp = _round_up(k, sub)          # padded rows of the pos VMEM block

    x_2d = x.reshape(R, M)
    # ":S" restriction + dtype pre-cast done once on the (tiny) table.
    # TODO(synk): with bf16 x this adds in bf16 (PyTorch would promote to f32).
    pos_2d = pos_table.reshape(P * D)[:N].reshape(k, M).astype(x.dtype)

    # Tile the flattened column axis.  Sizes come from *padded* footprints:
    # double-buffered (x + out + pos) must fit under the VMEM cap.
    vmem_cap = 48 << 20                               # safe even on v7x (64 MiB/TC)
    margin = 4 << 20                                  # compiler-internal scratch
    bytes_per_lane = 2 * (2 * Rp + kp) * itemsize     # x+out+pos, double-buffered
    budget_lanes = max(128, (vmem_cap - margin) // bytes_per_lane)
    target_lanes = max(128, target_tile_bytes // (itemsize * Rp))
    max_lanes = max(128, min(budget_lanes, target_lanes) // 128 * 128)

    tile = M if M <= max_lanes else max_lanes         # full extent or 128-aligned
    num_tiles = pl.cdiv(M, tile)

    # Non-tiny single-step problems: split in two so the 'parallel' axis can be
    # sharded across v7x's two TensorCores (no-op on single-core v5e/v6e).
    if num_tiles == 1 and M > 256 and Rp * M * itemsize > (1 << 20):
        half = _round_up(pl.cdiv(M, 2), 128)
        if half < M:
            tile = half
            num_tiles = pl.cdiv(M, tile)

    # Declared VMEM budget from padded, double-buffered block sizes (+ margin).
    vmem_bytes = int(min(max(bytes_per_lane * tile + margin, 16 << 20), vmem_cap))

    out_2d = pl.pallas_call(
        _add_pe_kernel,
        out_shape=jax.ShapeDtypeStruct((R, M), x.dtype),
        grid_spec=pl.GridSpec(
            grid=(num_tiles,),
            in_specs=[
                pl.BlockSpec((R, tile), lambda j: (0, j)),   # x tile (all rows)
                pl.BlockSpec((k, tile), lambda j: (0, j)),   # table tile
            ],
            out_specs=pl.BlockSpec((R, tile), lambda j: (0, j)),
        ),
        compiler_params=pltpu.CompilerParams(
            dimension_semantics=("parallel",),
            vmem_limit_bytes=vmem_bytes,
        ),
    )(x_2d, pos_2d)

    return out_2d.reshape(B, S, D)


if __name__ == "__main__":
    # Test 1: module-default toy shape -> single grid step, whole-array blocks,
    # sublane folding (B=2 -> view as (16, 32)).
    d_hid, n_position = 32, 200
    B, S = 2, 8
    pos_table = make_sinusoid_table(n_position, d_hid)
    x = jax.random.normal(jax.random.PRNGKey(0), (B, S, d_hid), dtype=jnp.float32)

    out = jax.block_until_ready(positional_encoding_forward(x, pos_table))
    ref = x + pos_table[:, :S, :]
    assert out.shape == (B, S, d_hid)
    assert jnp.allclose(out, ref, atol=1e-6), "mismatch vs reference (test 1)"

    # Test 2: unaligned shape + tiny tile target -> multi-tile grid with a
    # ragged (masked) last block, folding B=3 -> (24, 600).
    d_hid2, n_position2 = 96, 64
    B2, S2 = 3, 50
    pos_table2 = make_sinusoid_table(n_position2, d_hid2)
    x2 = jax.random.normal(jax.random.PRNGKey(0), (B2, S2, d_hid2), dtype=jnp.float32)

    out2 = jax.block_until_ready(
        positional_encoding_forward(x2, pos_table2, target_tile_bytes=4 * 1024)
    )
    ref2 = x2 + pos_table2[:, :S2, :]
    assert out2.shape == (B2, S2, d_hid2)
    assert jnp.allclose(out2, ref2, atol=1e-6), "mismatch vs reference (test 2)"

    print("KERNEL_OK")
</pallas_src>

<mosaic_0001>
module attributes {stable_mosaic.version = 11 : i64} {
  func.func @_add_pe_kernel(%arg0: i32, %arg1: memref<16x32xf32, #tpu.memory_space<vmem>>, %arg2: memref<8x32xf32, #tpu.memory_space<vmem>>, %arg3: memref<16x32xf32, #tpu.memory_space<vmem>>) attributes {dimension_semantics = [#tpu.dimension_semantics<parallel>], iteration_bounds = array<i64: 1>, scalar_prefetch = 0 : i64, scratch_operands = 0 : i64, tpu.core_type = #tpu.core_type<tc>, window_params = [{transform_indices = @transform_0, window_bounds = array<i64: 16, 32>}, {transform_indices = @transform_1, window_bounds = array<i64: 8, 32>}, {transform_indices = @transform_2, window_bounds = array<i64: 16, 32>}]} {
    %c0 = arith.constant 0 : index
    %c0_0 = arith.constant 0 : index
    %0 = vector.load %arg2[%c0, %c0_0] : memref<8x32xf32, #tpu.memory_space<vmem>>, vector<8x32xf32>
    %1 = tpu.concatenate %0, %0 in 0 : vector<8x32xf32>, vector<8x32xf32> -> vector<16x32xf32>
    %c0_1 = arith.constant 0 : index
    %c0_2 = arith.constant 0 : index
    %2 = vector.load %arg1[%c0_1, %c0_2] : memref<16x32xf32, #tpu.memory_space<vmem>>, vector<16x32xf32>
    %3 = arith.addf %2, %1 : vector<16x32xf32>
    %c0_3 = arith.constant 0 : index
    %c0_4 = arith.constant 0 : index
    %4 = vector.load %arg3[%c0_3, %c0_4] : memref<16x32xf32, #tpu.memory_space<vmem>>, vector<16x32xf32>
    tpu.vector_store %arg3[%c0_3, %c0_4], %3 {strides = array<i32>} : memref<16x32xf32, #tpu.memory_space<vmem>>, vector<16x32xf32>,
    return
  }
  func.func @transform_0(%arg0: i32) -> (i32, i32) {
    %c0_i32 = arith.constant 0 : i32
    %c0_i32_0 = arith.constant 0 : i32
    return %c0_i32, %arg0 : i32, i32
  }
  func.func @transform_1(%arg0: i32) -> (i32, i32) {
    %c0_i32 = arith.constant 0 : i32
    %c0_i32_0 = arith.constant 0 : i32
    return %c0_i32, %arg0 : i32, i32
  }
  func.func @transform_2(%arg0: i32) -> (i32, i32) {
    %c0_i32 = arith.constant 0 : i32
    %c0_i32_0 = arith.constant 0 : i32
    return %c0_i32, %arg0 : i32, i32
  }
}

</mosaic_0001>

<llo_original>
// kernel: tpu_custom_call.1
$region0: #{tpu_custom_call.1}
  #allocation0 [shape = 'u32[]', space=smem, size = 0x4, offset = 0x4, fixed_abs, tag = 'smem constant byte address 0x4 - core index']
  #allocation1 [shape = 'u32[72,128]{1,0:T(1,128)}', space=vmem, size = 0x9000, scoped, tag = 'internal scratch']
  %s0 = inlined_call_operand.hbm [shape: f32[16,32], index: 0, kind: input, shape index: {}]
  %s1 = inlined_call_operand.hbm [shape: f32[8,32], index: 1, kind: input, shape index: {}]
  %s2 = inlined_call_operand.hbm [shape: f32[16,32], index: 2, kind: output, shape index: {}]
  %s3 = sld [smem:[#allocation0]]
  $region26: #{tpu_custom_call.1} parent=0
    _
  %s5 = ssub.s32 1, %s3
  %s6 = scalar_select 0, %s5, %s3
  $region1: #{tpu_custom_call.1} parent=0
    #allocation2 [shape = 'u8[8192]{0}', space=vmem, size = 0x2000, scoped, tag = 'input window, operand 0, single buffered']
    #allocation3 [shape = 's32[1]{0}', space=sflag, size = 0x4, scoped, tag = 'scoped memory for tpu_custom_call.1']
    #allocation4 [shape = 's32[1]{0}', space=sflag, size = 0x4, scoped, tag = 'scoped memory for tpu_custom_call.1']
    #allocation5 [shape = 'u8[4096]{0}', space=vmem, size = 0x1000, scoped, tag = 'input window, operand 1, single buffered']
    #allocation6 [shape = 's32[1]{0}', space=sflag, size = 0x4, scoped, tag = 'scoped memory for tpu_custom_call.1']
    #allocation7 [shape = 'u8[8192]{0}', space=vmem, size = 0x2000, scoped, tag = 'output window, operand 0, single buffered']
    %7 = vsyncpa [#allocation3], 0
    %8 = vsyncpa [#allocation6], 0
    %9 = vsyncpa [#allocation4], 0
    // Predicated region
    $region2: #{tpu_custom_call.1} parent=1 // pred_check
      _
    $region3: #{tpu_custom_call.1} parent=1 // pred_check_branch
      %11 = sbr.rel (0) target = $region5
    $region4: #{tpu_custom_call.1} parent=1 // pred_region
      %13 = vsyncadd [#allocation3], 0
      %s14 = sshll.u32 %s0, 4
      %s15 = int_to_ptr.hbm [resolvable:$true] %s14
      %s16 = sshll.u32 [#allocation2], 4
      %s17 = int_to_ptr.vmem [resolvable:$true] %s16
      %22 = dma.hbm_to_vmem [thread:$0]  %s15, 256, %s17, [#allocation3], 128, 128, 8
    $region5: #{tpu_custom_call.1} parent=1 // pred_fallthru
      _
    // Predicated region
    $region6: #{tpu_custom_call.1} parent=1 // pred_check
      _
    $region7: #{tpu_custom_call.1} parent=1 // pred_check_branch
      %24 = sbr.rel (0) target = $region9
    $region8: #{tpu_custom_call.1} parent=1 // pred_region
      %26 = vsyncadd [#allocation6], 0
      %s28 = sshll.u32 %s1, 4
      %s29 = int_to_ptr.hbm [resolvable:$true] %s28
      %s30 = sshll.u32 [#allocation5], 4
      %s31 = int_to_ptr.vmem [resolvable:$true] %s30
      %33 = dma.hbm_to_vmem [thread:$0]  %s29, 128, %s31, [#allocation6]
    $region9: #{tpu_custom_call.1} parent=1 // pred_fallthru
      _
    // Predicated region
    $region10: #{tpu_custom_call.1} parent=1 // pred_check
      _
    $region11: #{tpu_custom_call.1} parent=1 // pred_check_branch
      %35 = sbr.rel (0) target = $region13
    $region12: #{tpu_custom_call.1} parent=1 // pred_region
      %37 = dma.done [#allocation3], 256
    $region13: #{tpu_custom_call.1} parent=1 // pred_fallthru
      _
    // Predicated region
    $region14: #{tpu_custom_call.1} parent=1 // pred_check
      _
    $region15: #{tpu_custom_call.1} parent=1 // pred_check_branch
      %39 = sbr.rel (0) target = $region17
    $region16: #{tpu_custom_call.1} parent=1 // pred_region
      %41 = dma.done [#allocation6], 128
    $region17: #{tpu_custom_call.1} parent=1 // pred_fallthru
      _
    %v42 = vld [vmem:[#allocation5] sm:$0xff]
    %v43 = vld [vmem:[#allocation2] sm:$0xff]
    %v44 = vld [vmem:[#allocation2 + $0x8] sm:$0xff]
    %v45 = vadd.f32 %v43, %v42
    %v46 = vadd.f32 %v44, %v42
    %vm47 = vcmask 261120
    %48 = vst.msk [vmem:[#allocation7] sm:$0xff] %vm47, %v45
    %49 = vst.msk [vmem:[#allocation7 + $0x8] sm:$0xff] %vm47, %v46
    // Predicated region
    $region18: #{tpu_custom_call.1} parent=1 // pred_check
      _
    $region19: #{tpu_custom_call.1} parent=1 // pred_check_branch
      %51 = sbr.rel (0) target = $region21
    $region20: #{tpu_custom_call.1} parent=1 // pred_region
      %53 = vsyncadd [#allocation4], 0
      %s54 = sshll.u32 [#allocation7], 4
      %s55 = int_to_ptr.vmem [resolvable:$true] %s54
      %s56 = sshll.u32 %s2, 4
      %s57 = int_to_ptr.hbm [resolvable:$true] %s56
      %62 = dma.vmem_to_hbm [thread:$0]  %s55, 256, %s57, [#allocation4], 128, 128, 8
    $region21: #{tpu_custom_call.1} parent=1 // pred_fallthru
      _
    // Predicated region
    $region22: #{tpu_custom_call.1} parent=1 // pred_check
      _
    $region23: #{tpu_custom_call.1} parent=1 // pred_check_branch
      %64 = sbr.rel (0) target = $region25
    $region24: #{tpu_custom_call.1} parent=1 // pred_region
      %66 = dma.done [#allocation4], 256
    $region25: #{tpu_custom_call.1} parent=1 // pred_fallthru
      _
    %67 = vsyncpa [#allocation3], 1
    %68 = vsyncpa [#allocation6], 1
    %69 = vsyncpa [#allocation4], 1

</llo_original>
